<compile_context>
chip_gen: v7x
topology: tpu7x:2x2x1
jax: 0.10.0
libtpu: 0.0.40
codegen_flags: <defaults>
</compile_context>

<pallas_src>
import functools

import jax
import jax.numpy as jnp
from jax.experimental import pallas as pl
from jax.experimental.pallas import tpu as pltpu

LANES = 128        # TPU vreg lane width
HIDDEN = 64        # logical hidden width of the ActorNet MLP
HIDDEN_PAD = 128   # hidden padded to a full vreg of lanes (zeros are ReLU-safe)
NEG_BIG = -1e30    # fills padded logit lanes so softmax ignores them


def _round_up(x, m):
    return (x + m - 1) // m * m


def actor_kernel(x_ref, w1_ref, b1_ref, w2_ref, b2_ref, w3_ref, b3_ref, out_ref):
    """One batch tile of softmax(relu(relu(x@W1+b1)@W2+b2)@W3+b3)."""
    x = x_ref[...]                       # (TB, n_state), bf16

    # Linear(n_state, H) + ReLU  (MXU in bf16, accumulate/bias/ReLU in f32)
    h1 = jnp.dot(x, w1_ref[...], preferred_element_type=jnp.float32) + b1_ref[...]
    h1 = jnp.maximum(h1, 0.0)

    # Linear(H, H) + ReLU
    h2 = jnp.dot(h1.astype(w2_ref.dtype), w2_ref[...],
                 preferred_element_type=jnp.float32) + b2_ref[...]
    h2 = jnp.maximum(h2, 0.0)

    # Linear(H, A_pad); padded logit lanes get NEG_BIG through the b3 padding.
    logits = jnp.dot(h2.astype(w3_ref.dtype), w3_ref[...],
                     preferred_element_type=jnp.float32) + b3_ref[...]

    # Numerically stable softmax over the lane-dense last dim.
    #   * row-max stays on the XLU,
    #   * row-sum goes to the (idle) MXU as exp(logits) @ ones_{128x1} (bf16
    #     operands, f32 accumulation) -> halves cross-lane XLU work per row,
    #   * exact EUP reciprocal (not approx) so probabilities sum to 1.
    m = jnp.max(logits, axis=-1, keepdims=True)
    e = jnp.exp(logits - m)                                   # padded lanes -> 0
    ones_col = jnp.ones((e.shape[-1], 1), dtype=jnp.bfloat16)
    s = jnp.dot(e.astype(jnp.bfloat16), ones_col,
                preferred_element_type=jnp.float32)           # (TB, 1)
    out_ref[...] = (e * pl.reciprocal(s)).astype(out_ref.dtype)


def _pad2d(a, shape, dtype, fill=0.0):
    out = jnp.full(shape, fill, dtype=dtype)
    return out.at[: a.shape[0], : a.shape[1]].set(a.astype(dtype))


@functools.partial(
    jax.jit,
    static_argnames=("block_batch", "compute_dtype", "core_parallel",
                     "vmem_limit_bytes"))
def actor_net_forward(x, w1, b1, w2, b2, w3, b3, *, block_batch=4096,
                      compute_dtype=jnp.bfloat16, core_parallel=False,
                      vmem_limit_bytes=None):
    """Full ActorNet forward: batch-tiled Pallas kernel, returns (batch, n_action) probs.

    block_batch: rows per grid step.  VMEM footprint per step is roughly
      2*tb*(n_state*2B + 128*2B) (double-buffered x + bf16 out tiles), i.e.
      ~4 MiB at tb=8192 -- far inside every generation's scoped VMEM default.
      Sweep 2048-8192 (up to ~16384 on v7x; raise vmem_limit_bytes if you push
      past ~16k on v5e/v6e's 128 MiB VMEM).
    core_parallel: set True on v7x to shard batch tiles across the 2 TensorCores.
    """
    batch, n_state = x.shape
    n_action = w3.shape[1]
    a_pad = LANES                                   # lane-dense output width

    # ---- parameter prep: pad hidden/output to 128 lanes; weights bf16, biases f32 ----
    w1p = _pad2d(w1, (n_state, HIDDEN_PAD), compute_dtype)
    b1p = _pad2d(b1, (1, HIDDEN_PAD), jnp.float32)
    w2p = _pad2d(w2, (HIDDEN_PAD, HIDDEN_PAD), compute_dtype)
    b2p = _pad2d(b2, (1, HIDDEN_PAD), jnp.float32)
    w3p = _pad2d(w3, (HIDDEN_PAD, a_pad), compute_dtype)
    b3p = _pad2d(b3, (1, a_pad), jnp.float32, fill=NEG_BIG)

    # ---- input prep: only cast/pad when actually needed (avoid extra HBM passes) ----
    xp = x if x.dtype == compute_dtype else x.astype(compute_dtype)
    padded_batch = _round_up(batch, 8)              # sublane alignment only
    if padded_batch != batch:
        xp = jnp.zeros((padded_batch, n_state), compute_dtype).at[:batch].set(xp)

    # ---- batch tiling: tb rows per grid step; ragged last block is clipped ----
    tb = min(_round_up(block_batch, 8), padded_batch)
    grid = pl.cdiv(padded_batch, tb)

    const = lambda i: (0, 0)                        # weights/biases: VMEM-resident

    semantics = (pltpu.CORE_PARALLEL,) if core_parallel else ("parallel",)

    out = pl.pallas_call(
        actor_kernel,
        # bf16 output: halves HBM write traffic (the dominant stream); still a
        # full 128-lane unmasked vst.  Sliced + upcast to f32 below.
        out_shape=jax.ShapeDtypeStruct((padded_batch, a_pad), jnp.bfloat16),
        grid_spec=pltpu.PrefetchScalarGridSpec(
            num_scalar_prefetch=0,
            grid=(grid,),
            in_specs=[
                pl.BlockSpec((tb, n_state), lambda i: (i, 0)),        # x tile
                pl.BlockSpec((n_state, HIDDEN_PAD), const),           # W1
                pl.BlockSpec((1, HIDDEN_PAD), const),                 # b1
                pl.BlockSpec((HIDDEN_PAD, HIDDEN_PAD), const),        # W2
                pl.BlockSpec((1, HIDDEN_PAD), const),                 # b2
                pl.BlockSpec((HIDDEN_PAD, a_pad), const),             # W3
                pl.BlockSpec((1, a_pad), const),                      # b3
            ],
            # TODO(synk): on v5e sweep pipeline_mode=pl.Buffered(3) here if the
            # output writeback shows up exposed at tile boundaries.
            out_specs=pl.BlockSpec((tb, a_pad), lambda i: (i, 0)),
        ),
        compiler_params=pltpu.CompilerParams(
            dimension_semantics=semantics,
            vmem_limit_bytes=vmem_limit_bytes,
        ),
    )(xp, w1p, b1p, w2p, b2p, w3p, b3p)

    # Narrow slice + f32 upcast (tiny, keeps the original module's output dtype).
    return out[:batch, :n_action].astype(jnp.float32)


def init_params(key, n_state, n_action, hidden=HIDDEN):
    """Deterministic synthetic parameters (shapes match the nn.Linear layers)."""
    k1, k2, k3, k4, k5, k6 = jax.random.split(key, 6)

    def uniform(k, shape, fan_in):
        bound = 1.0 / jnp.sqrt(jnp.float32(fan_in))
        return jax.random.uniform(k, shape, jnp.float32, -bound, bound)

    w1 = uniform(k1, (n_state, hidden), n_state)
    b1 = uniform(k2, (1, hidden), n_state)
    w2 = uniform(k3, (hidden, hidden), hidden)
    b2 = uniform(k4, (hidden, hidden // hidden * n_action) if False else (hidden, hidden), hidden)  # noqa: E501 (keep shapes explicit below)
    b2 = uniform(k4, (1, hidden), hidden)
    w3 = uniform(k5, (hidden, n_action), hidden)
    b3 = uniform(k6, (1, n_action), hidden)
    return w1, b1, w2, b2, w3, b3


def actor_net_ref(x, w1, b1, w2, b2, w3, b3, compute_dtype=jnp.bfloat16):
    """Pure-JAX reference with the same bf16-matmul / f32-accumulate recipe.

    Note: bf16 operands + bf16 output + MXU-summed softmax mean the kernel
    matches an all-f32 PyTorch nn.Linear reference only to ~1e-2 level.
    """
    cd = compute_dtype
    h1 = jnp.maximum(
        jnp.dot(x.astype(cd), w1.astype(cd), preferred_element_type=jnp.float32) + b1, 0.0)
    h2 = jnp.maximum(
        jnp.dot(h1.astype(cd), w2.astype(cd), preferred_element_type=jnp.float32) + b2, 0.0)
    logits = jnp.dot(h2.astype(cd), w3.astype(cd), preferred_element_type=jnp.float32) + b3
    return jax.nn.softmax(logits, axis=-1)


def _check(batch, n_state, n_action, block_batch):
    key = jax.random.PRNGKey(0)
    kx, kp = jax.random.split(key)
    x = jax.random.normal(kx, (batch, n_state), dtype=jnp.float32)
    params = init_params(kp, n_state, n_action)

    out = actor_net_forward(x, *params, block_batch=block_batch)
    out = jax.block_until_ready(out)

    ref = actor_net_ref(x, *params)
    assert out.shape == (batch, n_action)
    assert jnp.allclose(out, ref, atol=1e-2, rtol=1e-2)
    assert jnp.allclose(jnp.sum(out, axis=-1), jnp.ones((batch,)), atol=1e-2)


if __name__ == "__main__":
    # Small correctness shapes (tune/benchmark only at production batch sizes).
    n_state, n_action = 4, 6
    _check(batch=8, n_state=n_state, n_action=n_action, block_batch=4096)   # single tile
    _check(batch=20, n_state=n_state, n_action=n_action, block_batch=16)    # multi-tile + ragged last block
    print("KERNEL_OK")
</pallas_src>

<mosaic_0001>
module attributes {stable_mosaic.version = 11 : i64} {
  func.func @actor_kernel(%arg0: i32, %arg1: memref<8x4xbf16, #tpu.memory_space<vmem>>, %arg2: memref<4x128xbf16, #tpu.memory_space<vmem>>, %arg3: memref<1x128xf32, #tpu.memory_space<vmem>>, %arg4: memref<128x128xbf16, #tpu.memory_space<vmem>>, %arg5: memref<1x128xf32, #tpu.memory_space<vmem>>, %arg6: memref<128x128xbf16, #tpu.memory_space<vmem>>, %arg7: memref<1x128xf32, #tpu.memory_space<vmem>>, %arg8: memref<8x128xbf16, #tpu.memory_space<vmem>>) attributes {dimension_semantics = [#tpu.dimension_semantics<parallel>], iteration_bounds = array<i64: 1>, scalar_prefetch = 0 : i64, scratch_operands = 0 : i64, tpu.core_type = #tpu.core_type<tc>, window_params = [{transform_indices = @transform_0, window_bounds = array<i64: 8, 4>}, {pipeline_mode = #tpu.pipeline_mode<synchronous>, transform_indices = @transform_1, window_bounds = array<i64: 4, 128>}, {pipeline_mode = #tpu.pipeline_mode<synchronous>, transform_indices = @transform_2, window_bounds = array<i64: 1, 128>}, {pipeline_mode = #tpu.pipeline_mode<synchronous>, transform_indices = @transform_3, window_bounds = array<i64: 128, 128>}, {pipeline_mode = #tpu.pipeline_mode<synchronous>, transform_indices = @transform_4, window_bounds = array<i64: 1, 128>}, {pipeline_mode = #tpu.pipeline_mode<synchronous>, transform_indices = @transform_5, window_bounds = array<i64: 128, 128>}, {pipeline_mode = #tpu.pipeline_mode<synchronous>, transform_indices = @transform_6, window_bounds = array<i64: 1, 128>}, {transform_indices = @transform_7, window_bounds = array<i64: 8, 128>}]} {
    %c0 = arith.constant 0 : index
    %c0_0 = arith.constant 0 : index
    %0 = vector.load %arg1[%c0, %c0_0] : memref<8x4xbf16, #tpu.memory_space<vmem>>, vector<8x4xbf16>
    %c0_1 = arith.constant 0 : index
    %c0_2 = arith.constant 0 : index
    %1 = vector.load %arg2[%c0_1, %c0_2] : memref<4x128xbf16, #tpu.memory_space<vmem>>, vector<4x128xbf16>
    %cst = arith.constant dense<0.000000e+00> : vector<8x128xf32>
    %2 = tpu.matmul %0, %1, %cst {dimension_numbers = #tpu.dot_dimension_numbers<[1], [0], [0], [1], [0, 0, 1, 1], [], []>} : vector<8x4xbf16>, vector<4x128xbf16>, vector<8x128xf32> -> vector<8x128xf32>
    %c0_3 = arith.constant 0 : index
    %c0_4 = arith.constant 0 : index
    %3 = vector.load %arg3[%c0_3, %c0_4] : memref<1x128xf32, #tpu.memory_space<vmem>>, vector<1x128xf32>
    %4 = vector.broadcast %3 : vector<1x128xf32> to vector<8x128xf32>
    %5 = arith.addf %2, %4 : vector<8x128xf32>
    %cst_5 = arith.constant 0.000000e+00 : f32
    %6 = vector.broadcast %cst_5 : f32 to vector<8x128xf32>
    %7 = arith.maximumf %5, %6 : vector<8x128xf32>
    %8 = arith.truncf %7 : vector<8x128xf32> to vector<8x128xbf16>
    %c0_6 = arith.constant 0 : index
    %c0_7 = arith.constant 0 : index
    %9 = vector.load %arg4[%c0_6, %c0_7] : memref<128x128xbf16, #tpu.memory_space<vmem>>, vector<128x128xbf16>
    %cst_8 = arith.constant dense<0.000000e+00> : vector<8x128xf32>
    %10 = tpu.matmul %8, %9, %cst_8 {dimension_numbers = #tpu.dot_dimension_numbers<[1], [0], [0], [1], [0, 0, 1, 1], [], []>} : vector<8x128xbf16>, vector<128x128xbf16>, vector<8x128xf32> -> vector<8x128xf32>
    %c0_9 = arith.constant 0 : index
    %c0_10 = arith.constant 0 : index
    %11 = vector.load %arg5[%c0_9, %c0_10] : memref<1x128xf32, #tpu.memory_space<vmem>>, vector<1x128xf32>
    %12 = vector.broadcast %11 : vector<1x128xf32> to vector<8x128xf32>
    %13 = arith.addf %10, %12 : vector<8x128xf32>
    %cst_11 = arith.constant 0.000000e+00 : f32
    %14 = vector.broadcast %cst_11 : f32 to vector<8x128xf32>
    %15 = arith.maximumf %13, %14 : vector<8x128xf32>
    %16 = arith.truncf %15 : vector<8x128xf32> to vector<8x128xbf16>
    %c0_12 = arith.constant 0 : index
    %c0_13 = arith.constant 0 : index
    %17 = vector.load %arg6[%c0_12, %c0_13] : memref<128x128xbf16, #tpu.memory_space<vmem>>, vector<128x128xbf16>
    %cst_14 = arith.constant dense<0.000000e+00> : vector<8x128xf32>
    %18 = tpu.matmul %16, %17, %cst_14 {dimension_numbers = #tpu.dot_dimension_numbers<[1], [0], [0], [1], [0, 0, 1, 1], [], []>} : vector<8x128xbf16>, vector<128x128xbf16>, vector<8x128xf32> -> vector<8x128xf32>
    %c0_15 = arith.constant 0 : index
    %c0_16 = arith.constant 0 : index
    %19 = vector.load %arg7[%c0_15, %c0_16] : memref<1x128xf32, #tpu.memory_space<vmem>>, vector<1x128xf32>
    %20 = vector.broadcast %19 : vector<1x128xf32> to vector<8x128xf32>
    %21 = arith.addf %18, %20 : vector<8x128xf32>
    %cst_17 = arith.constant dense<0xFF800000> : vector<8xf32>
    %22 = vector.multi_reduction <maximumf>, %21, %cst_17 [1] : vector<8x128xf32> to vector<8xf32>
    %23 = vector.shape_cast %22 : vector<8xf32> to vector<8x1xf32>
    %24 = vector.broadcast %23 : vector<8x1xf32> to vector<8x128xf32>
    %25 = arith.subf %21, %24 : vector<8x128xf32>
    %26 = math.exp %25 : vector<8x128xf32>
    %cst_18 = arith.constant 1.000000e+00 : bf16
    %27 = vector.broadcast %cst_18 : bf16 to vector<128x1xbf16>
    %28 = arith.truncf %26 : vector<8x128xf32> to vector<8x128xbf16>
    %cst_19 = arith.constant dense<0.000000e+00> : vector<8x1xf32>
    %29 = tpu.matmul %28, %27, %cst_19 {dimension_numbers = #tpu.dot_dimension_numbers<[1], [0], [0], [1], [0, 0, 1, 1], [], []>} : vector<8x128xbf16>, vector<128x1xbf16>, vector<8x1xf32> -> vector<8x1xf32>
    %30 = tpu.reciprocal %29 : vector<8x1xf32> -> vector<8x1xf32>
    %31 = vector.broadcast %30 : vector<8x1xf32> to vector<8x128xf32>
    %32 = arith.mulf %26, %31 : vector<8x128xf32>
    %33 = arith.truncf %32 : vector<8x128xf32> to vector<8x128xbf16>
    %c0_20 = arith.constant 0 : index
    %c0_21 = arith.constant 0 : index
    %34 = vector.load %arg8[%c0_20, %c0_21] : memref<8x128xbf16, #tpu.memory_space<vmem>>, vector<8x128xbf16>
    tpu.vector_store %arg8[%c0_20, %c0_21], %33 {strides = array<i32>} : memref<8x128xbf16, #tpu.memory_space<vmem>>, vector<8x128xbf16>,
    return
  }
  func.func @transform_0(%arg0: i32) -> (i32, i32) {
    %c0_i32 = arith.constant 0 : i32
    %c0_i32_0 = arith.constant 0 : i32
    return %arg0, %c0_i32 : i32, i32
  }
  func.func @transform_1(%arg0: i32) -> (i32, i32) {
    %c0_i32 = arith.constant 0 : i32
    %c0_i32_0 = arith.constant 0 : i32
    %c0_i32_1 = arith.constant 0 : i32
    return %c0_i32, %c0_i32_0 : i32, i32
  }
  func.func @transform_2(%arg0: i32) -> (i32, i32) {
    %c0_i32 = arith.constant 0 : i32
    %c0_i32_0 = arith.constant 0 : i32
    %c0_i32_1 = arith.constant 0 : i32
    return %c0_i32, %c0_i32_0 : i32, i32
  }
  func.func @transform_3(%arg0: i32) -> (i32, i32) {
    %c0_i32 = arith.constant 0 : i32
    %c0_i32_0 = arith.constant 0 : i32
    %c0_i32_1 = arith.constant 0 : i32
    return %c0_i32, %c0_i32_0 : i32, i32
  }
  func.func @transform_4(%arg0: i32) -> (i32, i32) {
    %c0_i32 = arith.constant 0 : i32
    %c0_i32_0 = arith.constant 0 : i32
    %c0_i32_1 = arith.constant 0 : i32
    return %c0_i32, %c0_i32_0 : i32, i32
  }
  func.func @transform_5(%arg0: i32) -> (i32, i32) {
    %c0_i32 = arith.constant 0 : i32
    %c0_i32_0 = arith.constant 0 : i32
    %c0_i32_1 = arith.constant 0 : i32
    return %c0_i32, %c0_i32_0 : i32, i32
  }
  func.func @transform_6(%arg0: i32) -> (i32, i32) {
    %c0_i32 = arith.constant 0 : i32
    %c0_i32_0 = arith.constant 0 : i32
    %c0_i32_1 = arith.constant 0 : i32
    return %c0_i32, %c0_i32_0 : i32, i32
  }
  func.func @transform_7(%arg0: i32) -> (i32, i32) {
    %c0_i32 = arith.constant 0 : i32
    %c0_i32_0 = arith.constant 0 : i32
    return %arg0, %c0_i32 : i32, i32
  }
}

</mosaic_0001>

<llo_original>
// kernel: actor_net_forward.1
$region0: #{actor_net_forward.1}
  #allocation0 [shape = 'u32[]', space=smem, size = 0x4, offset = 0x4, fixed_abs, tag = 'smem constant byte address 0x4 - core index']
  #allocation1 [shape = 'u32[144,128]{1,0:T(1,128)}', space=vmem, size = 0x12000, scoped, tag = 'internal scratch']
  %s0 = inlined_call_operand.vmem [shape: bf16[8,4], index: 0, kind: input, shape index: {}]
  %s1 = inlined_call_operand.vmem [shape: bf16[4,128], index: 1, kind: input, shape index: {}]
  %s2 = inlined_call_operand.vmem [shape: f32[1,128], index: 2, kind: input, shape index: {}]
  %s3 = inlined_call_operand.vmem [shape: bf16[128,128], index: 3, kind: input, shape index: {}]
  %s4 = inlined_call_operand.vmem [shape: f32[1,128], index: 4, kind: input, shape index: {}]
  %s5 = inlined_call_operand.vmem [shape: bf16[128,128], index: 5, kind: input, shape index: {}]
  %s6 = inlined_call_operand.vmem [shape: f32[1,128], index: 6, kind: input, shape index: {}]
  %s7 = inlined_call_operand.vmem [shape: bf16[8,128], index: 7, kind: output, shape index: {}]
  %s8 = sld [smem:[#allocation0]]
  $region38: #{actor_net_forward.1} parent=0
    _
  %s10 = ssub.s32 1, %s8
  %s11 = scalar_select 0, %s10, %s8
  // Predicated region
  $region2: #{actor_net_forward.1} parent=0 // pred_check
    _
  $region3: #{actor_net_forward.1} parent=0 // pred_check_branch
    %13 = sbr.rel (0) target = $region5
  $region4: #{actor_net_forward.1} parent=0 // pred_region
    _
  $region5: #{actor_net_forward.1} parent=0 // pred_fallthru
    _
  // Predicated region
  $region6: #{actor_net_forward.1} parent=0 // pred_check
    _
  $region7: #{actor_net_forward.1} parent=0 // pred_check_branch
    %15 = sbr.rel (0) target = $region9
  $region8: #{actor_net_forward.1} parent=0 // pred_region
    _
  $region9: #{actor_net_forward.1} parent=0 // pred_fallthru
    _
  // Predicated region
  $region10: #{actor_net_forward.1} parent=0 // pred_check
    _
  $region11: #{actor_net_forward.1} parent=0 // pred_check_branch
    %17 = sbr.rel (0) target = $region13
  $region12: #{actor_net_forward.1} parent=0 // pred_region
    _
  $region13: #{actor_net_forward.1} parent=0 // pred_fallthru
    _
  // Predicated region
  $region14: #{actor_net_forward.1} parent=0 // pred_check
    _
  $region15: #{actor_net_forward.1} parent=0 // pred_check_branch
    %19 = sbr.rel (0) target = $region17
  $region16: #{actor_net_forward.1} parent=0 // pred_region
    _
  $region17: #{actor_net_forward.1} parent=0 // pred_fallthru
    _
  // Predicated region
  $region18: #{actor_net_forward.1} parent=0 // pred_check
    _
  $region19: #{actor_net_forward.1} parent=0 // pred_check_branch
    %21 = sbr.rel (0) target = $region21
  $region20: #{actor_net_forward.1} parent=0 // pred_region
    _
  $region21: #{actor_net_forward.1} parent=0 // pred_fallthru
    _
  // Predicated region
  $region22: #{actor_net_forward.1} parent=0 // pred_check
    _
  $region23: #{actor_net_forward.1} parent=0 // pred_check_branch
    %23 = sbr.rel (0) target = $region25
  $region24: #{actor_net_forward.1} parent=0 // pred_region
    _
  $region25: #{actor_net_forward.1} parent=0 // pred_fallthru
    _
  // Predicated region
  $region26: #{actor_net_forward.1} parent=0 // pred_check
    _
  $region27: #{actor_net_forward.1} parent=0 // pred_check_branch
    %25 = sbr.rel (0) target = $region29
  $region28: #{actor_net_forward.1} parent=0 // pred_region
    _
  $region29: #{actor_net_forward.1} parent=0 // pred_fallthru
    _
  %v28 = vld [vmem:[%s0] sm:$0xf]
  %v29 = vld [vmem:[%s1] sm:$0x3]
  %v30 = vld [vmem:[%s2] sm:$0x1]
  %v32 = vlaneseq
  %v33 = vshrl.u32 %v32, 7
  %v34 = vsub.s32 0, %v33
  %v35 = vrot.slane %v30, %v34
  %vm37 = vcmask 31744
  %v39 = vsel %vm37, %v28, 0
  %vm41 = vcmask 1041408
  %v43 = vsel %vm41, %v29, 0
  %45 = vmatprep.subr.bf16.mxu0 0
  %46 = vmatpush1.bf16.msra.mxu0 %v43
  %47 = vmatprep.subr.bf16.mxu0 0
  %48 = vmatpush1.bf16.msra.mxu0 0
  %49 = vmatprep.subr.bf16.mxu0 0
  %50 = vmatpush1.bf16.msra.mxu0 0
  %51 = vmatprep.subr.bf16.mxu0 0
  %52 = vmatpush1.bf16.msra.mxu0 0
  %53 = vmatprep.subr.bf16.mxu0 0
  %54 = vmatpush1.bf16.msra.mxu0 0
  %55 = vmatprep.subr.bf16.mxu0 0
  %56 = vmatpush1.bf16.msra.mxu0 0
  %57 = vmatprep.subr.bf16.mxu0 0
  %58 = vmatpush1.bf16.msra.mxu0 0
  %59 = vmatprep.subr.bf16.mxu0 0
  %60 = vmatpush1.bf16.msra.mxu0 0
  %61 = vmatprep.subr.bf16.mxu0 0
  %62 = vmatpush1.bf16.msra.mxu0 0
  %63 = vmatprep.subr.bf16.mxu0 0
  %64 = vmatpush1.bf16.msra.mxu0 0
  %65 = vmatprep.subr.bf16.mxu0 0
  %66 = vmatpush1.bf16.msra.mxu0 0
  %67 = vmatprep.subr.bf16.mxu0 0
  %68 = vmatpush1.bf16.msra.mxu0 0
  %69 = vmatprep.subr.bf16.mxu0 0
  %70 = vmatpush1.bf16.msra.mxu0 0
  %71 = vmatprep.subr.bf16.mxu0 0
  %72 = vmatpush1.bf16.msra.mxu0 0
  %73 = vmatprep.subr.bf16.mxu0 0
  %74 = vmatpush1.bf16.msra.mxu0 0
  %75 = vmatprep.subr.bf16.mxu0 0
  %76 = vmatpush1.bf16.msra.mxu0 0
  %77 = vmatprep.mubr.bf16.mxu0 0
  %78 = vmatmul.mubr.bf16.gmra.mrb[0].mxu0 %v39
  %v79 = vpop.f32.mrb[0].mxu0
  %v80 = vadd.f32 %v35, %v79
  %v81 = vpop.f32.mrb[0].mxu0
  %v82 = vpop.f32.mrb[0].mxu0
  %v83 = vpop.f32.mrb[0].mxu0
  %84 = vdwg.mxu0
  %v85 = vmax.f32 %v80, 0.0
  %v86 = vpack.c.bf16 %v85, %v85
  %v87 = vld [vmem:[%s3] sm:$0xf]
  %v88 = vld [vmem:[%s3 + $0x4] sm:$0xf]
  %v89 = vld [vmem:[%s3 + $0x8] sm:$0xf]
  %v90 = vld [vmem:[%s3 + $0xc] sm:$0xf]
  %v91 = vld [vmem:[%s3 + $0x10] sm:$0xf]
  %v92 = vld [vmem:[%s3 + $0x14] sm:$0xf]
  %v93 = vld [vmem:[%s3 + $0x18] sm:$0xf]
  %v94 = vld [vmem:[%s3 + $0x1c] sm:$0xf]
  %v95 = vld [vmem:[%s3 + $0x20] sm:$0xf]
  %v96 = vld [vmem:[%s3 + $0x24] sm:$0xf]
  %v97 = vld [vmem:[%s3 + $0x28] sm:$0xf]
  %v98 = vld [vmem:[%s3 + $0x2c] sm:$0xf]
  %v99 = vld [vmem:[%s3 + $0x30] sm:$0xf]
  %v100 = vld [vmem:[%s3 + $0x34] sm:$0xf]
  %v101 = vld [vmem:[%s3 + $0x38] sm:$0xf]
  %v102 = vld [vmem:[%s3 + $0x3c] sm:$0xf]
  %v103 = vld [vmem:[%s4] sm:$0x1]
  %v105 = vlaneseq
  %v106 = vshrl.u32 %v105, 7
  %v107 = vsub.s32 0, %v106
  %v108 = vrot.slane %v103, %v107
  %v126 = vunpack.c.l.b16 %v87
  %v127 = vunpack.c.l.b16 %v88
  %v128 = vunpack.c.l.b16 %v89
  %v129 = vunpack.c.l.b16 %v90
  %v130 = vunpack.c.l.b16 %v91
  %v131 = vunpack.c.l.b16 %v92
  %v132 = vunpack.c.l.b16 %v93
  %v133 = vunpack.c.l.b16 %v94
  %v134 = vunpack.c.l.b16 %v95
  %v135 = vunpack.c.l.b16 %v96
  %v136 = vunpack.c.l.b16 %v97
  %v137 = vunpack.c.l.b16 %v98
  %v138 = vunpack.c.l.b16 %v99
  %v139 = vunpack.c.l.b16 %v100
  %v140 = vunpack.c.l.b16 %v101
  %v141 = vunpack.c.l.b16 %v102
  %v142 = vpack.c.b16 %v127, %v126
  %v143 = vpack.c.b16 %v129, %v128
  %v144 = vpack.c.b16 %v131, %v130
  %v145 = vpack.c.b16 %v133, %v132
  %v146 = vpack.c.b16 %v135, %v134
  %v147 = vpack.c.b16 %v137, %v136
  %v148 = vpack.c.b16 %v139, %v138
  %v149 = vpack.c.b16 %v141, %v140
  %158 = vmatprep.subr.bf16.mxu0 0
  %159 = vmatpush1.bf16.msra.mxu0 %v142
  %160 = vmatprep.subr.bf16.mxu0 0
  %161 = vmatpush1.bf16.msra.mxu0 %v143
  %162 = vmatprep.subr.bf16.mxu0 0
  %163 = vmatpush1.bf16.msra.mxu0 %v144
  %164 = vmatprep.subr.bf16.mxu0 0
  %165 = vmatpush1.bf16.msra.mxu0 %v145
  %166 = vmatprep.subr.bf16.mxu0 0
  %167 = vmatpush1.bf16.msra.mxu0 %v146
  %168 = vmatprep.subr.bf16.mxu0 0
  %169 = vmatpush1.bf16.msra.mxu0 %v147
  %170 = vmatprep.subr.bf16.mxu0 0
  %171 = vmatpush1.bf16.msra.mxu0 %v148
  %172 = vmatprep.subr.bf16.mxu0 0
  %173 = vmatpush1.bf16.msra.mxu0 %v149
  %174 = vmatprep.subr.bf16.mxu0 0
  %175 = vmatpush1.bf16.msra.mxu0 0
  %176 = vmatprep.subr.bf16.mxu0 0
  %177 = vmatpush1.bf16.msra.mxu0 0
  %178 = vmatprep.subr.bf16.mxu0 0
  %179 = vmatpush1.bf16.msra.mxu0 0
  %180 = vmatprep.subr.bf16.mxu0 0
  %181 = vmatpush1.bf16.msra.mxu0 0
  %182 = vmatprep.subr.bf16.mxu0 0
  %183 = vmatpush1.bf16.msra.mxu0 0
  %184 = vmatprep.subr.bf16.mxu0 0
  %185 = vmatpush1.bf16.msra.mxu0 0
  %186 = vmatprep.subr.bf16.mxu0 0
  %187 = vmatpush1.bf16.msra.mxu0 0
  %188 = vmatprep.subr.bf16.mxu0 0
  %189 = vmatpush1.bf16.msra.mxu0 0
  %190 = vmatprep.mubr.bf16.mxu0 0
  %191 = vmatmul.mubr.bf16.gmra.mrb[0].mxu0 %v86
  %v192 = vpop.f32.mrb[0].mxu0
  %v193 = vadd.f32 %v108, %v192
  %v194 = vpop.f32.mrb[0].mxu0
  %v195 = vpop.f32.mrb[0].mxu0
  %v196 = vpop.f32.mrb[0].mxu0
  %197 = vdwg.mxu0
  %v198 = vmax.f32 %v193, 0.0
  %v199 = vpack.c.bf16 %v198, %v198
  %v200 = vld [vmem:[%s5] sm:$0xf]
  %v201 = vld [vmem:[%s5 + $0x4] sm:$0xf]
  %v202 = vld [vmem:[%s5 + $0x8] sm:$0xf]
  %v203 = vld [vmem:[%s5 + $0xc] sm:$0xf]
  %v204 = vld [vmem:[%s5 + $0x10] sm:$0xf]
  %v205 = vld [vmem:[%s5 + $0x14] sm:$0xf]
  %v206 = vld [vmem:[%s5 + $0x18] sm:$0xf]
  %v207 = vld [vmem:[%s5 + $0x1c] sm:$0xf]
  %v208 = vld [vmem:[%s5 + $0x20] sm:$0xf]
  %v209 = vld [vmem:[%s5 + $0x24] sm:$0xf]
  %v210 = vld [vmem:[%s5 + $0x28] sm:$0xf]
  %v211 = vld [vmem:[%s5 + $0x2c] sm:$0xf]
  %v212 = vld [vmem:[%s5 + $0x30] sm:$0xf]
  %v213 = vld [vmem:[%s5 + $0x34] sm:$0xf]
  %v214 = vld [vmem:[%s5 + $0x38] sm:$0xf]
  %v215 = vld [vmem:[%s5 + $0x3c] sm:$0xf]
  %v216 = vld [vmem:[%s6] sm:$0x1]
  %v218 = vlaneseq
  %v219 = vshrl.u32 %v218, 7
  %v220 = vsub.s32 0, %v219
  %v221 = vrot.slane %v216, %v220
  %v239 = vunpack.c.l.b16 %v200
  %v240 = vunpack.c.l.b16 %v201
  %v241 = vunpack.c.l.b16 %v202
  %v242 = vunpack.c.l.b16 %v203
  %v243 = vunpack.c.l.b16 %v204
  %v244 = vunpack.c.l.b16 %v205
  %v245 = vunpack.c.l.b16 %v206
  %v246 = vunpack.c.l.b16 %v207
  %v247 = vunpack.c.l.b16 %v208
  %v248 = vunpack.c.l.b16 %v209
  %v249 = vunpack.c.l.b16 %v210
  %v250 = vunpack.c.l.b16 %v211
  %v251 = vunpack.c.l.b16 %v212
  %v252 = vunpack.c.l.b16 %v213
  %v253 = vunpack.c.l.b16 %v214
  %v254 = vunpack.c.l.b16 %v215
  %v255 = vpack.c.b16 %v240, %v239
  %v256 = vpack.c.b16 %v242, %v241
  %v257 = vpack.c.b16 %v244, %v243
  %v258 = vpack.c.b16 %v246, %v245
  %v259 = vpack.c.b16 %v248, %v247
  %v260 = vpack.c.b16 %v250, %v249
  %v261 = vpack.c.b16 %v252, %v251
  %v262 = vpack.c.b16 %v254, %v253
  %271 = vmatprep.subr.bf16.mxu0 0
  %272 = vmatpush1.bf16.msra.mxu0 %v255
  %273 = vmatprep.subr.bf16.mxu0 0
  %274 = vmatpush1.bf16.msra.mxu0 %v256
  %275 = vmatprep.subr.bf16.mxu0 0
  %276 = vmatpush1.bf16.msra.mxu0 %v257
  %277 = vmatprep.subr.bf16.mxu0 0
  %278 = vmatpush1.bf16.msra.mxu0 %v258
  %279 = vmatprep.subr.bf16.mxu0 0
  %280 = vmatpush1.bf16.msra.mxu0 %v259
  %281 = vmatprep.subr.bf16.mxu0 0
  %282 = vmatpush1.bf16.msra.mxu0 %v260
  %283 = vmatprep.subr.bf16.mxu0 0
  %284 = vmatpush1.bf16.msra.mxu0 %v261
  %285 = vmatprep.subr.bf16.mxu0 0
  %286 = vmatpush1.bf16.msra.mxu0 %v262
  %287 = vmatprep.subr.bf16.mxu0 0
  %288 = vmatpush1.bf16.msra.mxu0 0
  %289 = vmatprep.subr.bf16.mxu0 0
  %290 = vmatpush1.bf16.msra.mxu0 0
  %291 = vmatprep.subr.bf16.mxu0 0
  %292 = vmatpush1.bf16.msra.mxu0 0
  %293 = vmatprep.subr.bf16.mxu0 0
  %294 = vmatpush1.bf16.msra.mxu0 0
  %295 = vmatprep.subr.bf16.mxu0 0
  %296 = vmatpush1.bf16.msra.mxu0 0
  %297 = vmatprep.subr.bf16.mxu0 0
  %298 = vmatpush1.bf16.msra.mxu0 0
  %299 = vmatprep.subr.bf16.mxu0 0
  %300 = vmatpush1.bf16.msra.mxu0 0
  %301 = vmatprep.subr.bf16.mxu0 0
  %302 = vmatpush1.bf16.msra.mxu0 0
  %303 = vmatprep.mubr.bf16.mxu0 0
  %304 = vmatmul.mubr.bf16.gmra.mrb[0].mxu0 %v199
  %v305 = vpop.f32.mrb[0].mxu0
  %v306 = vadd.f32 %v221, %v305
  %v307 = vpop.f32.mrb[0].mxu0
  %v308 = vpop.f32.mrb[0].mxu0
  %v309 = vpop.f32.mrb[0].mxu0
  %310 = vdwg.mxu0
  %311 = vmax.xlane.f32.xlu0 %v306
  %v312 = vpop.xlane.xlu0 %311
  %v313 = vsub.f32 %v306, %v312
  %v314 = vmul.f32 %v313, 1.442695
  %v315 = vpow.pop %v314
  %v316 = vpack.c.bf16 %v315, %v315
  %317 = vmatprep.subr.bf16.mxu0 0
  %318 = vmatpush1.bf16.msra.mxu0 1065369472
  %319 = vmatprep.subr.bf16.mxu0 0
  %320 = vmatpush1.bf16.msra.mxu0 1065369472
  %321 = vmatprep.subr.bf16.mxu0 0
  %322 = vmatpush1.bf16.msra.mxu0 1065369472
  %323 = vmatprep.subr.bf16.mxu0 0
  %324 = vmatpush1.bf16.msra.mxu0 1065369472
  %325 = vmatprep.subr.bf16.mxu0 0
  %326 = vmatpush1.bf16.msra.mxu0 1065369472
  %327 = vmatprep.subr.bf16.mxu0 0
  %328 = vmatpush1.bf16.msra.mxu0 1065369472
  %329 = vmatprep.subr.bf16.mxu0 0
  %330 = vmatpush1.bf16.msra.mxu0 1065369472
  %331 = vmatprep.subr.bf16.mxu0 0
  %332 = vmatpush1.bf16.msra.mxu0 1065369472
  %333 = vmatprep.subr.bf16.mxu0 0
  %334 = vmatpush1.bf16.msra.mxu0 0
  %335 = vmatprep.subr.bf16.mxu0 0
  %336 = vmatpush1.bf16.msra.mxu0 0
  %337 = vmatprep.subr.bf16.mxu0 0
  %338 = vmatpush1.bf16.msra.mxu0 0
  %339 = vmatprep.subr.bf16.mxu0 0
  %340 = vmatpush1.bf16.msra.mxu0 0
  %341 = vmatprep.subr.bf16.mxu0 0
  %342 = vmatpush1.bf16.msra.mxu0 0
  %343 = vmatprep.subr.bf16.mxu0 0
  %344 = vmatpush1.bf16.msra.mxu0 0
  %345 = vmatprep.subr.bf16.mxu0 0
  %346 = vmatpush1.bf16.msra.mxu0 0
  %347 = vmatprep.subr.bf16.mxu0 0
  %348 = vmatpush1.bf16.msra.mxu0 0
  %349 = vmatprep.mubr.bf16.mxu0 0
  %350 = vmatmul.mubr.bf16.gmra.mrb[0].mxu0 %v316
  %v351 = vpop.f32.mrb[0].mxu0
  %v352 = vadd.f32 0.0, %v351
  %v353 = vpop.f32.mrb[0].mxu0
  %v354 = vpop.f32.mrb[0].mxu0
  %v355 = vpop.f32.mrb[0].mxu0
  %356 = vdwg.mxu0
  %v357 = vrcp.pop %v352
  %359 = vset.pattern.permute.xlu0 0
  %360 = vperm.xlu0 %359, %v357
  %v361 = vpop.permute.xlu0 %360
  %v363 = vmul.f32 %v315, %v361
  %v364 = vpack.c.bf16 %v363, %v363
  %365 = vst [vmem:[%s7] sm:$0xf] %v364
  // Predicated region
  $region30: #{actor_net_forward.1} parent=0 // pred_check
    _
  $region31: #{actor_net_forward.1} parent=0 // pred_check_branch
    %367 = sbr.rel (0) target = $region33
  $region32: #{actor_net_forward.1} parent=0 // pred_region
    _
  $region33: #{actor_net_forward.1} parent=0 // pred_fallthru
    _
  // Predicated region
  $region34: #{actor_net_forward.1} parent=0 // pred_check
    _
  $region35: #{actor_net_forward.1} parent=0 // pred_check_branch
    %369 = sbr.rel (0) target = $region37
  $region36: #{actor_net_forward.1} parent=0 // pred_region
    _
  $region37: #{actor_net_forward.1} parent=0 // pred_fallthru
    _

</llo_original>
